<compile_context>
chip_gen: v5e
topology: v5e:2x2
jax: 0.10.0
libtpu: 0.0.40
codegen_flags: <defaults>
</compile_context>

<pallas_src>
import functools
import math

import jax
import jax.numpy as jnp
from jax.experimental import pallas as pl
from jax.experimental.pallas import tpu as pltpu


def _round_up(x, m):
    return (x + m - 1) // m * m


# ---------------------------------------------------------------------------
# Fused kernel: layer1 (matmul+matmul+bias+relu) -> layer2 (matmul+matmul+bias)
#               -> masked log_softmax, all on VMEM-resident padded blocks.
# ---------------------------------------------------------------------------
def fused_gcn_kernel(x_ref, w1_ref, b1_ref, adj_ref, w2_ref, b2_ref, out_ref,
                     *, num_classes, with_relu):
    # ----- layer 1: h = relu(adj @ (x @ W1) + b1) -------------------------
    support1 = jnp.dot(x_ref[...], w1_ref[...],
                       preferred_element_type=jnp.float32)          # MXU, bf16 in / f32 acc
    h = jnp.dot(adj_ref[...], support1.astype(jnp.bfloat16),
                preferred_element_type=jnp.float32)                  # MXU
    h = h + b1_ref[...]                                              # VPU, f32
    if with_relu:
        h = jnp.maximum(h, 0.0)

    # ----- layer 2: z = adj @ (h @ W2) + b2 --------------------------------
    support2 = jnp.dot(h.astype(jnp.bfloat16), w2_ref[...],
                       preferred_element_type=jnp.float32)           # MXU
    z = jnp.dot(adj_ref[...], support2.astype(jnp.bfloat16),
                preferred_element_type=jnp.float32)                  # MXU
    z = z + b2_ref[...]

    # ----- masked log_softmax over the first `num_classes` lanes -----------
    lane = jax.lax.broadcasted_iota(jnp.int32, z.shape, dimension=1)
    valid = lane < num_classes
    z_m = jnp.where(valid, z, -jnp.inf)
    m = jnp.max(z_m, axis=1, keepdims=True)
    shifted = z_m - m
    e = jnp.where(valid, jnp.exp(shifted), 0.0)                      # EUP exp
    lse = jnp.log(jnp.sum(e, axis=1, keepdims=True))                 # XLU reduce + EUP log
    out = jnp.where(valid, shifted - lse, 0.0)                       # padded lanes -> 0 (sliced off)
    out_ref[...] = out.astype(out_ref.dtype)


# ---------------------------------------------------------------------------
# Wrapper: pad everything to lane-dense shapes, single fused pallas_call,
#          slice the valid block back out.
# ---------------------------------------------------------------------------
@functools.partial(jax.jit, static_argnames=("with_relu",))
def gcn_forward(x, adj, params, with_relu=True):
    """params: [(W1, b1), (W2, b2)] for the 2-layer GCN."""
    (w1, b1), (w2, b2) = params
    n, f = x.shape
    h_dim = w1.shape[1]
    c = w2.shape[1]

    # Pad node / feature / hidden / class dims up to multiples of 128 so every
    # matmul operand and the output are lane-dense. Zero padding keeps results exact.
    n_pad = _round_up(n, 128)
    f_pad = _round_up(f, 128)
    h_pad = _round_up(h_dim, 128)
    c_pad = _round_up(c, 128)

    x_p = jnp.zeros((n_pad, f_pad), jnp.bfloat16).at[:n, :f].set(x.astype(jnp.bfloat16))
    adj_p = jnp.zeros((n_pad, n_pad), jnp.bfloat16).at[:n, :n].set(adj.astype(jnp.bfloat16))
    w1_p = jnp.zeros((f_pad, h_pad), jnp.bfloat16).at[:f, :h_dim].set(w1.astype(jnp.bfloat16))
    b1_p = jnp.zeros((1, h_pad), jnp.float32).at[:, :h_dim].set(b1.reshape(1, -1).astype(jnp.float32))
    w2_p = jnp.zeros((h_pad, c_pad), jnp.bfloat16).at[:h_dim, :c].set(w2.astype(jnp.bfloat16))
    b2_p = jnp.zeros((1, c_pad), jnp.float32).at[:, :c].set(b2.reshape(1, -1).astype(jnp.float32))

    kernel = functools.partial(fused_gcn_kernel, num_classes=c, with_relu=with_relu)
    out_pad = pl.pallas_call(
        kernel,
        out_shape=jax.ShapeDtypeStruct((n_pad, c_pad), jnp.float32),
        in_specs=[pl.BlockSpec(memory_space=pltpu.MemorySpace.VMEM)] * 6,
        out_specs=pl.BlockSpec(memory_space=pltpu.MemorySpace.VMEM),
        compiler_params=pltpu.CompilerParams(vmem_limit_bytes=32 * 1024 * 1024),
    )(x_p, w1_p, b1_p, adj_p, w2_p, b2_p)

    return out_pad[:n, :c]


# ---------------------------------------------------------------------------
# Deterministic parameter init (matches GraphConvolution.reset_parameters)
# ---------------------------------------------------------------------------
def init_gcn_params(key, num_features, hidden_dim, num_classes, nlayers=2):
    dims = [num_features] + [hidden_dim] * (nlayers - 1) + [num_classes]
    params = []
    for i in range(nlayers):
        fan_in, fan_out = dims[i], dims[i + 1]
        key, sub = jax.random.split(key)
        # xavier_uniform_ on weight.T -> same symmetric bound sqrt(6/(fan_in+fan_out))
        bound = math.sqrt(6.0 / (fan_in + fan_out))
        w = jax.random.uniform(
            sub, (fan_in, fan_out), dtype=jnp.float32, minval=-bound, maxval=bound
        )
        b = jnp.zeros((1, fan_out), dtype=jnp.float32)  # bias zero-initialized
        params.append((w, b))
    return params


# ---------------------------------------------------------------------------
# Main
# ---------------------------------------------------------------------------
if __name__ == "__main__":
    key = jax.random.PRNGKey(0)

    num_nodes = 64
    num_features = 32
    hidden_dim = 32
    num_classes = 8

    key, kx, ka, kp = jax.random.split(key, 4)

    # node features
    x = jax.random.normal(kx, (num_nodes, num_features), dtype=jnp.float32)

    # dense, symmetrically-normalized adjacency with self-loops (A_hat)
    logits = jax.random.uniform(ka, (num_nodes, num_nodes))
    a = (logits > 0.8).astype(jnp.float32)
    a = jnp.maximum(a, a.T)                         # symmetrize
    a = a + jnp.eye(num_nodes, dtype=jnp.float32)   # self-loops
    deg = jnp.sum(a, axis=1)
    d_inv_sqrt = 1.0 / jnp.sqrt(deg)
    adj = a * d_inv_sqrt[:, None] * d_inv_sqrt[None, :]

    params = init_gcn_params(kp, num_features, hidden_dim, num_classes, nlayers=2)

    out = gcn_forward(x, adj, params, with_relu=True)
    out = jax.block_until_ready(out)

    # correctness check vs a pure-f32 JAX reference (kernel uses bf16 MXU inputs
    # with f32 accumulation -> allow bf16-level tolerance)
    h_ref = x
    for ix, (w, b) in enumerate(params):
        h_ref = adj @ (h_ref @ w) + b
        if ix != len(params) - 1:
            h_ref = jnp.maximum(h_ref, 0.0)
    ref = jax.nn.log_softmax(h_ref, axis=1)

    assert out.shape == (num_nodes, num_classes), f"bad shape {out.shape}"
    assert bool(jnp.all(jnp.isfinite(out))), "non-finite output"
    assert jnp.allclose(out, ref, atol=5e-2, rtol=5e-2), "mismatch vs reference"

    print("KERNEL_OK")
</pallas_src>

<mosaic_0001>
module attributes {stable_mosaic.version = 11 : i64} {
  func.func @fused_gcn_kernel(%arg0: memref<128x128xbf16, #tpu.memory_space<vmem>>, %arg1: memref<128x128xbf16, #tpu.memory_space<vmem>>, %arg2: memref<1x128xf32, #tpu.memory_space<vmem>>, %arg3: memref<128x128xbf16, #tpu.memory_space<vmem>>, %arg4: memref<128x128xbf16, #tpu.memory_space<vmem>>, %arg5: memref<1x128xf32, #tpu.memory_space<vmem>>, %arg6: memref<128x128xf32, #tpu.memory_space<vmem>>) attributes {dimension_semantics = [], scalar_prefetch = 0 : i64, scratch_operands = 0 : i64, tpu.core_type = #tpu.core_type<tc>} {
    %c0 = arith.constant 0 : index
    %c0_0 = arith.constant 0 : index
    %0 = vector.load %arg0[%c0, %c0_0] : memref<128x128xbf16, #tpu.memory_space<vmem>>, vector<128x128xbf16>
    %c0_1 = arith.constant 0 : index
    %c0_2 = arith.constant 0 : index
    %1 = vector.load %arg1[%c0_1, %c0_2] : memref<128x128xbf16, #tpu.memory_space<vmem>>, vector<128x128xbf16>
    %cst = arith.constant dense<0.000000e+00> : vector<128x128xf32>
    %2 = tpu.matmul %0, %1, %cst {dimension_numbers = #tpu.dot_dimension_numbers<[1], [0], [0], [1], [0, 0, 1, 1], [], []>} : vector<128x128xbf16>, vector<128x128xbf16>, vector<128x128xf32> -> vector<128x128xf32>
    %c0_3 = arith.constant 0 : index
    %c0_4 = arith.constant 0 : index
    %3 = vector.load %arg3[%c0_3, %c0_4] : memref<128x128xbf16, #tpu.memory_space<vmem>>, vector<128x128xbf16>
    %4 = arith.truncf %2 : vector<128x128xf32> to vector<128x128xbf16>
    %cst_5 = arith.constant dense<0.000000e+00> : vector<128x128xf32>
    %5 = tpu.matmul %3, %4, %cst_5 {dimension_numbers = #tpu.dot_dimension_numbers<[1], [0], [0], [1], [0, 0, 1, 1], [], []>} : vector<128x128xbf16>, vector<128x128xbf16>, vector<128x128xf32> -> vector<128x128xf32>
    %c0_6 = arith.constant 0 : index
    %c0_7 = arith.constant 0 : index
    %6 = vector.load %arg2[%c0_6, %c0_7] : memref<1x128xf32, #tpu.memory_space<vmem>>, vector<1x128xf32>
    %7 = vector.broadcast %6 : vector<1x128xf32> to vector<128x128xf32>
    %8 = arith.addf %5, %7 : vector<128x128xf32>
    %cst_8 = arith.constant 0.000000e+00 : f32
    %9 = vector.broadcast %cst_8 : f32 to vector<128x128xf32>
    %10 = arith.maximumf %8, %9 : vector<128x128xf32>
    %11 = arith.truncf %10 : vector<128x128xf32> to vector<128x128xbf16>
    %c0_9 = arith.constant 0 : index
    %c0_10 = arith.constant 0 : index
    %12 = vector.load %arg4[%c0_9, %c0_10] : memref<128x128xbf16, #tpu.memory_space<vmem>>, vector<128x128xbf16>
    %cst_11 = arith.constant dense<0.000000e+00> : vector<128x128xf32>
    %13 = tpu.matmul %11, %12, %cst_11 {dimension_numbers = #tpu.dot_dimension_numbers<[1], [0], [0], [1], [0, 0, 1, 1], [], []>} : vector<128x128xbf16>, vector<128x128xbf16>, vector<128x128xf32> -> vector<128x128xf32>
    %c0_12 = arith.constant 0 : index
    %c0_13 = arith.constant 0 : index
    %14 = vector.load %arg3[%c0_12, %c0_13] : memref<128x128xbf16, #tpu.memory_space<vmem>>, vector<128x128xbf16>
    %15 = arith.truncf %13 : vector<128x128xf32> to vector<128x128xbf16>
    %cst_14 = arith.constant dense<0.000000e+00> : vector<128x128xf32>
    %16 = tpu.matmul %14, %15, %cst_14 {dimension_numbers = #tpu.dot_dimension_numbers<[1], [0], [0], [1], [0, 0, 1, 1], [], []>} : vector<128x128xbf16>, vector<128x128xbf16>, vector<128x128xf32> -> vector<128x128xf32>
    %c0_15 = arith.constant 0 : index
    %c0_16 = arith.constant 0 : index
    %17 = vector.load %arg5[%c0_15, %c0_16] : memref<1x128xf32, #tpu.memory_space<vmem>>, vector<1x128xf32>
    %18 = vector.broadcast %17 : vector<1x128xf32> to vector<128x128xf32>
    %19 = arith.addf %16, %18 : vector<128x128xf32>
    %20 = tpu.iota {dimensions = array<i32: 1>} : vector<128x128xi32>
    %c8_i32 = arith.constant 8 : i32
    %21 = vector.broadcast %c8_i32 : i32 to vector<128x128xi32>
    %22 = arith.cmpi slt, %20, %21 : vector<128x128xi32>
    %cst_17 = arith.constant 0xFF800000 : f32
    %23 = vector.broadcast %cst_17 : f32 to vector<128x128xf32>
    %24 = arith.select %22, %19, %23 : vector<128x128xi1>, vector<128x128xf32>
    %cst_18 = arith.constant dense<0xFF800000> : vector<128xf32>
    %25 = vector.multi_reduction <maximumf>, %24, %cst_18 [1] : vector<128x128xf32> to vector<128xf32>
    %26 = vector.shape_cast %25 : vector<128xf32> to vector<128x1xf32>
    %27 = vector.broadcast %26 : vector<128x1xf32> to vector<128x128xf32>
    %28 = arith.subf %24, %27 : vector<128x128xf32>
    %29 = math.exp %28 : vector<128x128xf32>
    %cst_19 = arith.constant 0.000000e+00 : f32
    %30 = vector.broadcast %cst_19 : f32 to vector<128x128xf32>
    %31 = arith.select %22, %29, %30 : vector<128x128xi1>, vector<128x128xf32>
    %cst_20 = arith.constant dense<0.000000e+00> : vector<128xf32>
    %32 = vector.multi_reduction <add>, %31, %cst_20 [1] : vector<128x128xf32> to vector<128xf32>
    %33 = vector.shape_cast %32 : vector<128xf32> to vector<128x1xf32>
    %34 = math.log %33 : vector<128x1xf32>
    %35 = vector.broadcast %34 : vector<128x1xf32> to vector<128x128xf32>
    %36 = arith.subf %28, %35 : vector<128x128xf32>
    %cst_21 = arith.constant 0.000000e+00 : f32
    %37 = vector.broadcast %cst_21 : f32 to vector<128x128xf32>
    %38 = arith.select %22, %36, %37 : vector<128x128xi1>, vector<128x128xf32>
    %c0_22 = arith.constant 0 : index
    %c0_23 = arith.constant 0 : index
    %39 = vector.load %arg6[%c0_22, %c0_23] : memref<128x128xf32, #tpu.memory_space<vmem>>, vector<128x128xf32>
    tpu.vector_store %arg6[%c0_22, %c0_23], %38 {strides = array<i32>} : memref<128x128xf32, #tpu.memory_space<vmem>>, vector<128x128xf32>,
    return
  }
}

</mosaic_0001>

<llo_original>
// kernel: gcn_forward.1
$region0: #{gcn_forward.1}
  #allocation0 [shape = 'u32[]', space=smem, size = 0x4, offset = 0x4, fixed_abs, tag = 'smem constant byte address 0x4 - core index']
  #allocation1 [shape = 'u32[72,128]{1,0:T(1,128)}', space=vmem, size = 0x9000, scoped, tag = 'internal scratch']
  %s0 = inlined_call_operand.vmem [shape: bf16[128,128], index: 0, kind: input, shape index: {}]
  %s1 = inlined_call_operand.vmem [shape: bf16[128,128], index: 1, kind: input, shape index: {}]
  %s2 = inlined_call_operand.vmem [shape: f32[1,128], index: 2, kind: input, shape index: {}]
  %s3 = inlined_call_operand.vmem [shape: bf16[128,128], index: 3, kind: input, shape index: {}]
  %s4 = inlined_call_operand.vmem [shape: bf16[128,128], index: 4, kind: input, shape index: {}]
  %s5 = inlined_call_operand.vmem [shape: f32[1,128], index: 5, kind: input, shape index: {}]
  %s6 = inlined_call_operand.vmem [shape: f32[128,128], index: 6, kind: output, shape index: {}]
  %s7 = sld [smem:[#allocation0]]
  $region34: #{gcn_forward.1} parent=0
    _
  %s9 = ssub.s32 1, %s7
  %s10 = scalar_select 0, %s9, %s7
  // Predicated region
  $region2: #{gcn_forward.1} parent=0 // pred_check
    _
  $region3: #{gcn_forward.1} parent=0 // pred_check_branch
    %12 = sbr.rel (0) target = $region5
  $region4: #{gcn_forward.1} parent=0 // pred_region
    _
  $region5: #{gcn_forward.1} parent=0 // pred_fallthru
    _
  // Predicated region
  $region6: #{gcn_forward.1} parent=0 // pred_check
    _
  $region7: #{gcn_forward.1} parent=0 // pred_check_branch
    %14 = sbr.rel (0) target = $region9
  $region8: #{gcn_forward.1} parent=0 // pred_region
    _
  $region9: #{gcn_forward.1} parent=0 // pred_fallthru
    _
  // Predicated region
  $region10: #{gcn_forward.1} parent=0 // pred_check
    _
  $region11: #{gcn_forward.1} parent=0 // pred_check_branch
    %16 = sbr.rel (0) target = $region13
  $region12: #{gcn_forward.1} parent=0 // pred_region
    _
  $region13: #{gcn_forward.1} parent=0 // pred_fallthru
    _
  // Predicated region
  $region14: #{gcn_forward.1} parent=0 // pred_check
    _
  $region15: #{gcn_forward.1} parent=0 // pred_check_branch
    %18 = sbr.rel (0) target = $region17
  $region16: #{gcn_forward.1} parent=0 // pred_region
    _
  $region17: #{gcn_forward.1} parent=0 // pred_fallthru
    _
  // Predicated region
  $region18: #{gcn_forward.1} parent=0 // pred_check
    _
  $region19: #{gcn_forward.1} parent=0 // pred_check_branch
    %20 = sbr.rel (0) target = $region21
  $region20: #{gcn_forward.1} parent=0 // pred_region
    _
  $region21: #{gcn_forward.1} parent=0 // pred_fallthru
    _
  // Predicated region
  $region22: #{gcn_forward.1} parent=0 // pred_check
    _
  $region23: #{gcn_forward.1} parent=0 // pred_check_branch
    %22 = sbr.rel (0) target = $region25
  $region24: #{gcn_forward.1} parent=0 // pred_region
    _
  $region25: #{gcn_forward.1} parent=0 // pred_fallthru
    _
  %v23 = vld [vmem:[%s0] sm:$0xf]
  %v24 = vld [vmem:[%s0 + $0x4] sm:$0xf]
  %v25 = vld [vmem:[%s0 + $0x8] sm:$0xf]
  %v26 = vld [vmem:[%s0 + $0xc] sm:$0xf]
  %v27 = vld [vmem:[%s0 + $0x10] sm:$0xf]
  %v28 = vld [vmem:[%s0 + $0x14] sm:$0xf]
  %v29 = vld [vmem:[%s0 + $0x18] sm:$0xf]
  %v30 = vld [vmem:[%s0 + $0x1c] sm:$0xf]
  %v31 = vld [vmem:[%s0 + $0x20] sm:$0xf]
  %v32 = vld [vmem:[%s0 + $0x24] sm:$0xf]
  %v33 = vld [vmem:[%s0 + $0x28] sm:$0xf]
  %v34 = vld [vmem:[%s0 + $0x2c] sm:$0xf]
  %v35 = vld [vmem:[%s0 + $0x30] sm:$0xf]
  %v36 = vld [vmem:[%s0 + $0x34] sm:$0xf]
  %v37 = vld [vmem:[%s0 + $0x38] sm:$0xf]
  %v38 = vld [vmem:[%s0 + $0x3c] sm:$0xf]
  %v39 = vld [vmem:[%s1] sm:$0xf]
  %v40 = vld [vmem:[%s1 + $0x4] sm:$0xf]
  %v41 = vld [vmem:[%s1 + $0x8] sm:$0xf]
  %v42 = vld [vmem:[%s1 + $0xc] sm:$0xf]
  %v43 = vld [vmem:[%s1 + $0x10] sm:$0xf]
  %v44 = vld [vmem:[%s1 + $0x14] sm:$0xf]
  %v45 = vld [vmem:[%s1 + $0x18] sm:$0xf]
  %v46 = vld [vmem:[%s1 + $0x1c] sm:$0xf]
  %v47 = vld [vmem:[%s1 + $0x20] sm:$0xf]
  %v48 = vld [vmem:[%s1 + $0x24] sm:$0xf]
  %v49 = vld [vmem:[%s1 + $0x28] sm:$0xf]
  %v50 = vld [vmem:[%s1 + $0x2c] sm:$0xf]
  %v51 = vld [vmem:[%s1 + $0x30] sm:$0xf]
  %v52 = vld [vmem:[%s1 + $0x34] sm:$0xf]
  %v53 = vld [vmem:[%s1 + $0x38] sm:$0xf]
  %v54 = vld [vmem:[%s1 + $0x3c] sm:$0xf]
  %v71 = vunpack.c.l.b16 %v23
  %v72 = vunpack.c.l.b16 %v24
  %v73 = vunpack.c.l.b16 %v25
  %v74 = vunpack.c.l.b16 %v26
  %v75 = vunpack.c.l.b16 %v27
  %v76 = vunpack.c.l.b16 %v28
  %v77 = vunpack.c.l.b16 %v29
  %v78 = vunpack.c.l.b16 %v30
  %v79 = vunpack.c.l.b16 %v31
  %v80 = vunpack.c.l.b16 %v32
  %v81 = vunpack.c.l.b16 %v33
  %v82 = vunpack.c.l.b16 %v34
  %v83 = vunpack.c.l.b16 %v35
  %v84 = vunpack.c.l.b16 %v36
  %v85 = vunpack.c.l.b16 %v37
  %v86 = vunpack.c.l.b16 %v38
  %v87 = vpack.c.b16 %v72, %v71
  %v88 = vpack.c.b16 %v74, %v73
  %v89 = vpack.c.b16 %v76, %v75
  %v90 = vpack.c.b16 %v78, %v77
  %v91 = vpack.c.b16 %v80, %v79
  %v92 = vpack.c.b16 %v82, %v81
  %v93 = vpack.c.b16 %v84, %v83
  %v94 = vpack.c.b16 %v86, %v85
  %v119 = vunpack.c.l.b16 %v39
  %v120 = vunpack.c.l.b16 %v40
  %v121 = vunpack.c.l.b16 %v41
  %v122 = vunpack.c.l.b16 %v42
  %v123 = vunpack.c.l.b16 %v43
  %v124 = vunpack.c.l.b16 %v44
  %v125 = vunpack.c.l.b16 %v45
  %v126 = vunpack.c.l.b16 %v46
  %v127 = vunpack.c.l.b16 %v47
  %v128 = vunpack.c.l.b16 %v48
  %v129 = vunpack.c.l.b16 %v49
  %v130 = vunpack.c.l.b16 %v50
  %v131 = vunpack.c.l.b16 %v51
  %v132 = vunpack.c.l.b16 %v52
  %v133 = vunpack.c.l.b16 %v53
  %v134 = vunpack.c.l.b16 %v54
  %v135 = vpack.c.b16 %v120, %v119
  %v136 = vpack.c.b16 %v122, %v121
  %v137 = vpack.c.b16 %v124, %v123
  %v138 = vpack.c.b16 %v126, %v125
  %v139 = vpack.c.b16 %v128, %v127
  %v140 = vpack.c.b16 %v130, %v129
  %v141 = vpack.c.b16 %v132, %v131
  %v142 = vpack.c.b16 %v134, %v133
  %151 = vmatpush.bf16.msra.mxu0 %v142
  %152 = vmatpush.bf16.msra.mxu0 %v141
  %153 = vmatpush.bf16.msra.mxu0 %v140
  %154 = vmatpush.bf16.msra.mxu0 %v139
  %155 = vmatpush.bf16.msra.mxu0 %v138
  %156 = vmatpush.bf16.msra.mxu0 %v137
  %157 = vmatpush.bf16.msra.mxu0 %v136
  %158 = vmatpush.bf16.msra.mxu0 %v135
  %159 = vmatmul.bf16.gmra.mxu0 %v87
  %v160 = vpop.f32.mrf.mxu0
  %v161 = vadd.f32 0.0, %v160
  %v162 = vpop.f32.mrf.mxu0
  %v163 = vadd.f32 0.0, %v162
  %164 = vmatmul.bf16.gmra.mxu0 %v88
  %v165 = vpop.f32.mrf.mxu0
  %v166 = vadd.f32 0.0, %v165
  %v167 = vpop.f32.mrf.mxu0
  %v168 = vadd.f32 0.0, %v167
  %169 = vmatmul.bf16.gmra.mxu0 %v89
  %v170 = vpop.f32.mrf.mxu0
  %v171 = vadd.f32 0.0, %v170
  %v172 = vpop.f32.mrf.mxu0
  %v173 = vadd.f32 0.0, %v172
  %174 = vmatmul.bf16.gmra.mxu0 %v90
  %v175 = vpop.f32.mrf.mxu0
  %v176 = vadd.f32 0.0, %v175
  %v177 = vpop.f32.mrf.mxu0
  %v178 = vadd.f32 0.0, %v177
  %179 = vmatmul.bf16.gmra.mxu0 %v91
  %v180 = vpop.f32.mrf.mxu0
  %v181 = vadd.f32 0.0, %v180
  %v182 = vpop.f32.mrf.mxu0
  %v183 = vadd.f32 0.0, %v182
  %184 = vmatmul.bf16.gmra.mxu0 %v92
  %v185 = vpop.f32.mrf.mxu0
  %v186 = vadd.f32 0.0, %v185
  %v187 = vpop.f32.mrf.mxu0
  %v188 = vadd.f32 0.0, %v187
  %189 = vmatmul.bf16.gmra.mxu0 %v93
  %v190 = vpop.f32.mrf.mxu0
  %v191 = vadd.f32 0.0, %v190
  %v192 = vpop.f32.mrf.mxu0
  %v193 = vadd.f32 0.0, %v192
  %194 = vmatmul.bf16.gmra.mxu0 %v94
  %v195 = vpop.f32.mrf.mxu0
  %v196 = vadd.f32 0.0, %v195
  %v197 = vpop.f32.mrf.mxu0
  %v198 = vadd.f32 0.0, %v197
  %199 = vdwg.mxu0
  %v200 = vld [vmem:[%s3] sm:$0xf]
  %v201 = vld [vmem:[%s3 + $0x4] sm:$0xf]
  %v202 = vld [vmem:[%s3 + $0x8] sm:$0xf]
  %v203 = vld [vmem:[%s3 + $0xc] sm:$0xf]
  %v204 = vld [vmem:[%s3 + $0x10] sm:$0xf]
  %v205 = vld [vmem:[%s3 + $0x14] sm:$0xf]
  %v206 = vld [vmem:[%s3 + $0x18] sm:$0xf]
  %v207 = vld [vmem:[%s3 + $0x1c] sm:$0xf]
  %v208 = vld [vmem:[%s3 + $0x20] sm:$0xf]
  %v209 = vld [vmem:[%s3 + $0x24] sm:$0xf]
  %v210 = vld [vmem:[%s3 + $0x28] sm:$0xf]
  %v211 = vld [vmem:[%s3 + $0x2c] sm:$0xf]
  %v212 = vld [vmem:[%s3 + $0x30] sm:$0xf]
  %v213 = vld [vmem:[%s3 + $0x34] sm:$0xf]
  %v214 = vld [vmem:[%s3 + $0x38] sm:$0xf]
  %v215 = vld [vmem:[%s3 + $0x3c] sm:$0xf]
  %v216 = vpack.c.bf16 %v163, %v161
  %v217 = vpack.c.bf16 %v168, %v166
  %v218 = vpack.c.bf16 %v173, %v171
  %v219 = vpack.c.bf16 %v178, %v176
  %v220 = vpack.c.bf16 %v183, %v181
  %v221 = vpack.c.bf16 %v188, %v186
  %v222 = vpack.c.bf16 %v193, %v191
  %v223 = vpack.c.bf16 %v198, %v196
  %v224 = vld [vmem:[%s2] sm:$0x1]
  %v226 = vperm.slane %v224, 0
  %v244 = vunpack.c.l.b16 %v200
  %v245 = vunpack.c.l.b16 %v201
  %v246 = vunpack.c.l.b16 %v202
  %v247 = vunpack.c.l.b16 %v203
  %v248 = vunpack.c.l.b16 %v204
  %v249 = vunpack.c.l.b16 %v205
  %v250 = vunpack.c.l.b16 %v206
  %v251 = vunpack.c.l.b16 %v207
  %v252 = vunpack.c.l.b16 %v208
  %v253 = vunpack.c.l.b16 %v209
  %v254 = vunpack.c.l.b16 %v210
  %v255 = vunpack.c.l.b16 %v211
  %v256 = vunpack.c.l.b16 %v212
  %v257 = vunpack.c.l.b16 %v213
  %v258 = vunpack.c.l.b16 %v214
  %v259 = vunpack.c.l.b16 %v215
  %v260 = vpack.c.b16 %v245, %v244
  %v261 = vpack.c.b16 %v247, %v246
  %v262 = vpack.c.b16 %v249, %v248
  %v263 = vpack.c.b16 %v251, %v250
  %v264 = vpack.c.b16 %v253, %v252
  %v265 = vpack.c.b16 %v255, %v254
  %v266 = vpack.c.b16 %v257, %v256
  %v267 = vpack.c.b16 %v259, %v258
  %276 = vmatpush.bf16.msra.mxu0 %v223
  %277 = vmatpush.bf16.msra.mxu0 %v222
  %278 = vmatpush.bf16.msra.mxu0 %v221
  %279 = vmatpush.bf16.msra.mxu0 %v220
  %280 = vmatpush.bf16.msra.mxu0 %v219
  %281 = vmatpush.bf16.msra.mxu0 %v218
  %282 = vmatpush.bf16.msra.mxu0 %v217
  %283 = vmatpush.bf16.msra.mxu0 %v216
  %284 = vmatmul.bf16.gmra.mxu0 %v260
  %v285 = vpop.f32.mrf.mxu0
  %v286 = vadd.f32 %v226, %v285
  %v287 = vpop.f32.mrf.mxu0
  %v288 = vadd.f32 %v226, %v287
  %289 = vmatmul.bf16.gmra.mxu0 %v261
  %v290 = vpop.f32.mrf.mxu0
  %v291 = vadd.f32 %v226, %v290
  %v292 = vpop.f32.mrf.mxu0
  %v293 = vadd.f32 %v226, %v292
  %294 = vmatmul.bf16.gmra.mxu0 %v262
  %v295 = vpop.f32.mrf.mxu0
  %v296 = vadd.f32 %v226, %v295
  %v297 = vpop.f32.mrf.mxu0
  %v298 = vadd.f32 %v226, %v297
  %299 = vmatmul.bf16.gmra.mxu0 %v263
  %v300 = vpop.f32.mrf.mxu0
  %v301 = vadd.f32 %v226, %v300
  %v302 = vpop.f32.mrf.mxu0
  %v303 = vadd.f32 %v226, %v302
  %304 = vmatmul.bf16.gmra.mxu0 %v264
  %v305 = vpop.f32.mrf.mxu0
  %v306 = vadd.f32 %v226, %v305
  %v307 = vpop.f32.mrf.mxu0
  %v308 = vadd.f32 %v226, %v307
  %309 = vmatmul.bf16.gmra.mxu0 %v265
  %v310 = vpop.f32.mrf.mxu0
  %v311 = vadd.f32 %v226, %v310
  %v312 = vpop.f32.mrf.mxu0
  %v313 = vadd.f32 %v226, %v312
  %314 = vmatmul.bf16.gmra.mxu0 %v266
  %v315 = vpop.f32.mrf.mxu0
  %v316 = vadd.f32 %v226, %v315
  %v317 = vpop.f32.mrf.mxu0
  %v318 = vadd.f32 %v226, %v317
  %319 = vmatmul.bf16.gmra.mxu0 %v267
  %v320 = vpop.f32.mrf.mxu0
  %v321 = vadd.f32 %v226, %v320
  %v322 = vpop.f32.mrf.mxu0
  %v323 = vadd.f32 %v226, %v322
  %324 = vdwg.mxu0
  %v325 = vmax.f32 %v286, 0.0
  %v326 = vmax.f32 %v288, 0.0
  %v327 = vmax.f32 %v291, 0.0
  %v328 = vmax.f32 %v293, 0.0
  %v329 = vmax.f32 %v296, 0.0
  %v330 = vmax.f32 %v298, 0.0
  %v331 = vmax.f32 %v301, 0.0
  %v332 = vmax.f32 %v303, 0.0
  %v333 = vmax.f32 %v306, 0.0
  %v334 = vmax.f32 %v308, 0.0
  %v335 = vmax.f32 %v311, 0.0
  %v336 = vmax.f32 %v313, 0.0
  %v337 = vmax.f32 %v316, 0.0
  %v338 = vmax.f32 %v318, 0.0
  %v339 = vmax.f32 %v321, 0.0
  %v340 = vmax.f32 %v323, 0.0
  %v341 = vpack.c.bf16 %v326, %v325
  %v342 = vpack.c.bf16 %v328, %v327
  %v343 = vpack.c.bf16 %v330, %v329
  %v344 = vpack.c.bf16 %v332, %v331
  %v345 = vpack.c.bf16 %v334, %v333
  %v346 = vpack.c.bf16 %v336, %v335
  %v347 = vpack.c.bf16 %v338, %v337
  %v348 = vpack.c.bf16 %v340, %v339
  %v349 = vld [vmem:[%s4] sm:$0xf]
  %v350 = vld [vmem:[%s4 + $0x4] sm:$0xf]
  %v351 = vld [vmem:[%s4 + $0x8] sm:$0xf]
  %v352 = vld [vmem:[%s4 + $0xc] sm:$0xf]
  %v353 = vld [vmem:[%s4 + $0x10] sm:$0xf]
  %v354 = vld [vmem:[%s4 + $0x14] sm:$0xf]
  %v355 = vld [vmem:[%s4 + $0x18] sm:$0xf]
  %v356 = vld [vmem:[%s4 + $0x1c] sm:$0xf]
  %v357 = vld [vmem:[%s4 + $0x20] sm:$0xf]
  %v358 = vld [vmem:[%s4 + $0x24] sm:$0xf]
  %v359 = vld [vmem:[%s4 + $0x28] sm:$0xf]
  %v360 = vld [vmem:[%s4 + $0x2c] sm:$0xf]
  %v361 = vld [vmem:[%s4 + $0x30] sm:$0xf]
  %v362 = vld [vmem:[%s4 + $0x34] sm:$0xf]
  %v363 = vld [vmem:[%s4 + $0x38] sm:$0xf]
  %v364 = vld [vmem:[%s4 + $0x3c] sm:$0xf]
  %v381 = vunpack.c.l.b16 %v349
  %v382 = vunpack.c.l.b16 %v350
  %v383 = vunpack.c.l.b16 %v351
  %v384 = vunpack.c.l.b16 %v352
  %v385 = vunpack.c.l.b16 %v353
  %v386 = vunpack.c.l.b16 %v354
  %v387 = vunpack.c.l.b16 %v355
  %v388 = vunpack.c.l.b16 %v356
  %v389 = vunpack.c.l.b16 %v357
  %v390 = vunpack.c.l.b16 %v358
  %v391 = vunpack.c.l.b16 %v359
  %v392 = vunpack.c.l.b16 %v360
  %v393 = vunpack.c.l.b16 %v361
  %v394 = vunpack.c.l.b16 %v362
  %v395 = vunpack.c.l.b16 %v363
  %v396 = vunpack.c.l.b16 %v364
  %v397 = vpack.c.b16 %v382, %v381
  %v398 = vpack.c.b16 %v384, %v383
  %v399 = vpack.c.b16 %v386, %v385
  %v400 = vpack.c.b16 %v388, %v387
  %v401 = vpack.c.b16 %v390, %v389
  %v402 = vpack.c.b16 %v392, %v391
  %v403 = vpack.c.b16 %v394, %v393
  %v404 = vpack.c.b16 %v396, %v395
  %413 = vmatpush.bf16.msra.mxu0 %v404
  %414 = vmatpush.bf16.msra.mxu0 %v403
  %415 = vmatpush.bf16.msra.mxu0 %v402
  %416 = vmatpush.bf16.msra.mxu0 %v401
  %417 = vmatpush.bf16.msra.mxu0 %v400
  %418 = vmatpush.bf16.msra.mxu0 %v399
  %419 = vmatpush.bf16.msra.mxu0 %v398
  %420 = vmatpush.bf16.msra.mxu0 %v397
  %421 = vmatmul.bf16.gmra.mxu0 %v341
  %v422 = vpop.f32.mrf.mxu0
  %v423 = vadd.f32 0.0, %v422
  %v424 = vpop.f32.mrf.mxu0
  %v425 = vadd.f32 0.0, %v424
  %426 = vmatmul.bf16.gmra.mxu0 %v342
  %v427 = vpop.f32.mrf.mxu0
  %v428 = vadd.f32 0.0, %v427
  %v429 = vpop.f32.mrf.mxu0
  %v430 = vadd.f32 0.0, %v429
  %431 = vmatmul.bf16.gmra.mxu0 %v343
  %v432 = vpop.f32.mrf.mxu0
  %v433 = vadd.f32 0.0, %v432
  %v434 = vpop.f32.mrf.mxu0
  %v435 = vadd.f32 0.0, %v434
  %436 = vmatmul.bf16.gmra.mxu0 %v344
  %v437 = vpop.f32.mrf.mxu0
  %v438 = vadd.f32 0.0, %v437
  %v439 = vpop.f32.mrf.mxu0
  %v440 = vadd.f32 0.0, %v439
  %441 = vmatmul.bf16.gmra.mxu0 %v345
  %v442 = vpop.f32.mrf.mxu0
  %v443 = vadd.f32 0.0, %v442
  %v444 = vpop.f32.mrf.mxu0
  %v445 = vadd.f32 0.0, %v444
  %446 = vmatmul.bf16.gmra.mxu0 %v346
  %v447 = vpop.f32.mrf.mxu0
  %v448 = vadd.f32 0.0, %v447
  %v449 = vpop.f32.mrf.mxu0
  %v450 = vadd.f32 0.0, %v449
  %451 = vmatmul.bf16.gmra.mxu0 %v347
  %v452 = vpop.f32.mrf.mxu0
  %v453 = vadd.f32 0.0, %v452
  %v454 = vpop.f32.mrf.mxu0
  %v455 = vadd.f32 0.0, %v454
  %456 = vmatmul.bf16.gmra.mxu0 %v348
  %v457 = vpop.f32.mrf.mxu0
  %v458 = vadd.f32 0.0, %v457
  %v459 = vpop.f32.mrf.mxu0
  %v460 = vadd.f32 0.0, %v459
  %461 = vdwg.mxu0
  %v462 = vpack.c.bf16 %v425, %v423
  %v463 = vpack.c.bf16 %v430, %v428
  %v464 = vpack.c.bf16 %v435, %v433
  %v465 = vpack.c.bf16 %v440, %v438
  %v466 = vpack.c.bf16 %v445, %v443
  %v467 = vpack.c.bf16 %v450, %v448
  %v468 = vpack.c.bf16 %v455, %v453
  %v469 = vpack.c.bf16 %v460, %v458
  %v470 = vld [vmem:[%s5] sm:$0x1]
  %v472 = vperm.slane %v470, 0
  %474 = vmatpush.bf16.msra.mxu0 %v469
  %475 = vmatpush.bf16.msra.mxu0 %v468
  %476 = vmatpush.bf16.msra.mxu0 %v467
  %477 = vmatpush.bf16.msra.mxu0 %v466
  %478 = vmatpush.bf16.msra.mxu0 %v465
  %479 = vmatpush.bf16.msra.mxu0 %v464
  %480 = vmatpush.bf16.msra.mxu0 %v463
  %481 = vmatpush.bf16.msra.mxu0 %v462
  %482 = vmatmul.bf16.gmra.mxu0 %v260
  %v483 = vpop.f32.mrf.mxu0
  %v484 = vadd.f32 %v472, %v483
  %v485 = vpop.f32.mrf.mxu0
  %v486 = vadd.f32 %v472, %v485
  %487 = vmatmul.bf16.gmra.mxu0 %v261
  %v488 = vpop.f32.mrf.mxu0
  %v489 = vadd.f32 %v472, %v488
  %v490 = vpop.f32.mrf.mxu0
  %v491 = vadd.f32 %v472, %v490
  %492 = vmatmul.bf16.gmra.mxu0 %v262
  %v493 = vpop.f32.mrf.mxu0
  %v494 = vadd.f32 %v472, %v493
  %v495 = vpop.f32.mrf.mxu0
  %v496 = vadd.f32 %v472, %v495
  %497 = vmatmul.bf16.gmra.mxu0 %v263
  %v498 = vpop.f32.mrf.mxu0
  %v499 = vadd.f32 %v472, %v498
  %v500 = vpop.f32.mrf.mxu0
  %v501 = vadd.f32 %v472, %v500
  %502 = vmatmul.bf16.gmra.mxu0 %v264
  %v503 = vpop.f32.mrf.mxu0
  %v504 = vadd.f32 %v472, %v503
  %v505 = vpop.f32.mrf.mxu0
  %v506 = vadd.f32 %v472, %v505
  %507 = vmatmul.bf16.gmra.mxu0 %v265
  %v508 = vpop.f32.mrf.mxu0
  %v509 = vadd.f32 %v472, %v508
  %v510 = vpop.f32.mrf.mxu0
  %v511 = vadd.f32 %v472, %v510
  %512 = vmatmul.bf16.gmra.mxu0 %v266
  %v513 = vpop.f32.mrf.mxu0
  %v514 = vadd.f32 %v472, %v513
  %v515 = vpop.f32.mrf.mxu0
  %v516 = vadd.f32 %v472, %v515
  %517 = vmatmul.bf16.gmra.mxu0 %v267
  %v518 = vpop.f32.mrf.mxu0
  %v519 = vadd.f32 %v472, %v518
  %v520 = vpop.f32.mrf.mxu0
  %v521 = vadd.f32 %v472, %v520
  %522 = vdwg.mxu0
  %v523 = vlaneseq
  %v524 = vand.u32 %v523, 127
  %vm525 = vcmp.lt.s32.totalorder %v524, 8
  %v526 = vsel %vm525, %v484, -inf
  %v527 = vsel %vm525, %v486, -inf
  %v528 = vsel %vm525, %v489, -inf
  %v529 = vsel %vm525, %v491, -inf
  %v530 = vsel %vm525, %v494, -inf
  %v531 = vsel %vm525, %v496, -inf
  %v532 = vsel %vm525, %v499, -inf
  %v533 = vsel %vm525, %v501, -inf
  %v534 = vsel %vm525, %v504, -inf
  %v535 = vsel %vm525, %v506, -inf
  %v536 = vsel %vm525, %v509, -inf
  %v537 = vsel %vm525, %v511, -inf
  %v538 = vsel %vm525, %v514, -inf
  %v539 = vsel %vm525, %v516, -inf
  %v540 = vsel %vm525, %v519, -inf
  %v541 = vsel %vm525, %v521, -inf
  %542 = vmax.xlane.f32.xlu0 %v526
  %v543 = vpop.xlane.xlu0 %542
  %544 = vmax.xlane.f32.xlu0 %v527
  %v545 = vpop.xlane.xlu0 %544
  %546 = vmax.xlane.f32.xlu0 %v528
  %v547 = vpop.xlane.xlu0 %546
  %548 = vmax.xlane.f32.xlu0 %v529
  %v549 = vpop.xlane.xlu0 %548
  %550 = vmax.xlane.f32.xlu0 %v530
  %v551 = vpop.xlane.xlu0 %550
  %552 = vmax.xlane.f32.xlu0 %v531
  %v553 = vpop.xlane.xlu0 %552
  %554 = vmax.xlane.f32.xlu0 %v532
  %v555 = vpop.xlane.xlu0 %554
  %556 = vmax.xlane.f32.xlu0 %v533
  %v557 = vpop.xlane.xlu0 %556
  %558 = vmax.xlane.f32.xlu0 %v534
  %v559 = vpop.xlane.xlu0 %558
  %560 = vmax.xlane.f32.xlu0 %v535
  %v561 = vpop.xlane.xlu0 %560
  %562 = vmax.xlane.f32.xlu0 %v536
  %v563 = vpop.xlane.xlu0 %562
  %564 = vmax.xlane.f32.xlu0 %v537
  %v565 = vpop.xlane.xlu0 %564
  %566 = vmax.xlane.f32.xlu0 %v538
  %v567 = vpop.xlane.xlu0 %566
  %568 = vmax.xlane.f32.xlu0 %v539
  %v569 = vpop.xlane.xlu0 %568
  %570 = vmax.xlane.f32.xlu0 %v540
  %v571 = vpop.xlane.xlu0 %570
  %572 = vmax.xlane.f32.xlu0 %v541
  %v573 = vpop.xlane.xlu0 %572
  %v574 = vsub.f32 %v526, %v543
  %v575 = vsub.f32 %v527, %v545
  %v576 = vsub.f32 %v528, %v547
  %v577 = vsub.f32 %v529, %v549
  %v578 = vsub.f32 %v530, %v551
  %v579 = vsub.f32 %v531, %v553
  %v580 = vsub.f32 %v532, %v555
  %v581 = vsub.f32 %v533, %v557
  %v582 = vsub.f32 %v534, %v559
  %v583 = vsub.f32 %v535, %v561
  %v584 = vsub.f32 %v536, %v563
  %v585 = vsub.f32 %v537, %v565
  %v586 = vsub.f32 %v538, %v567
  %v587 = vsub.f32 %v539, %v569
  %v588 = vsub.f32 %v540, %v571
  %v589 = vsub.f32 %v541, %v573
  %v590 = vmul.f32 %v574, 1.442695
  %v591 = vpow.pop %v590
  %v592 = vmul.f32 %v575, 1.442695
  %v593 = vpow.pop %v592
  %v594 = vmul.f32 %v576, 1.442695
  %v595 = vpow.pop %v594
  %v596 = vmul.f32 %v577, 1.442695
  %v597 = vpow.pop %v596
  %v598 = vmul.f32 %v578, 1.442695
  %v599 = vpow.pop %v598
  %v600 = vmul.f32 %v579, 1.442695
  %v601 = vpow.pop %v600
  %v602 = vmul.f32 %v580, 1.442695
  %v603 = vpow.pop %v602
  %v604 = vmul.f32 %v581, 1.442695
  %v605 = vpow.pop %v604
  %v606 = vmul.f32 %v582, 1.442695
  %v607 = vpow.pop %v606
  %v608 = vmul.f32 %v583, 1.442695
  %v609 = vpow.pop %v608
  %v610 = vmul.f32 %v584, 1.442695
  %v611 = vpow.pop %v610
  %v612 = vmul.f32 %v585, 1.442695
  %v613 = vpow.pop %v612
  %v614 = vmul.f32 %v586, 1.442695
  %v615 = vpow.pop %v614
  %v616 = vmul.f32 %v587, 1.442695
  %v617 = vpow.pop %v616
  %v618 = vmul.f32 %v588, 1.442695
  %v619 = vpow.pop %v618
  %v620 = vmul.f32 %v589, 1.442695
  %v621 = vpow.pop %v620
  %v622 = vsel %vm525, %v591, 0.0
  %v623 = vsel %vm525, %v593, 0.0
  %v624 = vsel %vm525, %v595, 0.0
  %v625 = vsel %vm525, %v597, 0.0
  %v626 = vsel %vm525, %v599, 0.0
  %v627 = vsel %vm525, %v601, 0.0
  %v628 = vsel %vm525, %v603, 0.0
  %v629 = vsel %vm525, %v605, 0.0
  %v630 = vsel %vm525, %v607, 0.0
  %v631 = vsel %vm525, %v609, 0.0
  %v632 = vsel %vm525, %v611, 0.0
  %v633 = vsel %vm525, %v613, 0.0
  %v634 = vsel %vm525, %v615, 0.0
  %v635 = vsel %vm525, %v617, 0.0
  %v636 = vsel %vm525, %v619, 0.0
  %v637 = vsel %vm525, %v621, 0.0
  %638 = vadd.xlane.f32.xlu0 %v622
  %v639 = vpop.xlane.xlu0 %638
  %640 = vadd.xlane.f32.xlu0 %v623
  %v641 = vpop.xlane.xlu0 %640
  %642 = vadd.xlane.f32.xlu0 %v624
  %v643 = vpop.xlane.xlu0 %642
  %644 = vadd.xlane.f32.xlu0 %v625
  %v645 = vpop.xlane.xlu0 %644
  %646 = vadd.xlane.f32.xlu0 %v626
  %v647 = vpop.xlane.xlu0 %646
  %648 = vadd.xlane.f32.xlu0 %v627
  %v649 = vpop.xlane.xlu0 %648
  %650 = vadd.xlane.f32.xlu0 %v628
  %v651 = vpop.xlane.xlu0 %650
  %652 = vadd.xlane.f32.xlu0 %v629
  %v653 = vpop.xlane.xlu0 %652
  %654 = vadd.xlane.f32.xlu0 %v630
  %v655 = vpop.xlane.xlu0 %654
  %656 = vadd.xlane.f32.xlu0 %v631
  %v657 = vpop.xlane.xlu0 %656
  %658 = vadd.xlane.f32.xlu0 %v632
  %v659 = vpop.xlane.xlu0 %658
  %660 = vadd.xlane.f32.xlu0 %v633
  %v661 = vpop.xlane.xlu0 %660
  %662 = vadd.xlane.f32.xlu0 %v634
  %v663 = vpop.xlane.xlu0 %662
  %664 = vadd.xlane.f32.xlu0 %v635
  %v665 = vpop.xlane.xlu0 %664
  %666 = vadd.xlane.f32.xlu0 %v636
  %v667 = vpop.xlane.xlu0 %666
  %668 = vadd.xlane.f32.xlu0 %v637
  %v669 = vpop.xlane.xlu0 %668
  %v670 = vlog2.pop %v639
  %v671 = vmul.f32 %v670, 0.6931472
  %v672 = vlog2.pop %v641
  %v673 = vmul.f32 %v672, 0.6931472
  %v674 = vlog2.pop %v643
  %v675 = vmul.f32 %v674, 0.6931472
  %v676 = vlog2.pop %v645
  %v677 = vmul.f32 %v676, 0.6931472
  %v678 = vlog2.pop %v647
  %v679 = vmul.f32 %v678, 0.6931472
  %v680 = vlog2.pop %v649
  %v681 = vmul.f32 %v680, 0.6931472
  %v682 = vlog2.pop %v651
  %v683 = vmul.f32 %v682, 0.6931472
  %v684 = vlog2.pop %v653
  %v685 = vmul.f32 %v684, 0.6931472
  %v686 = vlog2.pop %v655
  %v687 = vmul.f32 %v686, 0.6931472
  %v688 = vlog2.pop %v657
  %v689 = vmul.f32 %v688, 0.6931472
  %v690 = vlog2.pop %v659
  %v691 = vmul.f32 %v690, 0.6931472
  %v692 = vlog2.pop %v661
  %v693 = vmul.f32 %v692, 0.6931472
  %v694 = vlog2.pop %v663
  %v695 = vmul.f32 %v694, 0.6931472
  %v696 = vlog2.pop %v665
  %v697 = vmul.f32 %v696, 0.6931472
  %v698 = vlog2.pop %v667
  %v699 = vmul.f32 %v698, 0.6931472
  %v700 = vlog2.pop %v669
  %v701 = vmul.f32 %v700, 0.6931472
  %v702 = vsub.f32 %v574, %v671
  %v703 = vsub.f32 %v575, %v673
  %v704 = vsub.f32 %v576, %v675
  %v705 = vsub.f32 %v577, %v677
  %v706 = vsub.f32 %v578, %v679
  %v707 = vsub.f32 %v579, %v681
  %v708 = vsub.f32 %v580, %v683
  %v709 = vsub.f32 %v581, %v685
  %v710 = vsub.f32 %v582, %v687
  %v711 = vsub.f32 %v583, %v689
  %v712 = vsub.f32 %v584, %v691
  %v713 = vsub.f32 %v585, %v693
  %v714 = vsub.f32 %v586, %v695
  %v715 = vsub.f32 %v587, %v697
  %v716 = vsub.f32 %v588, %v699
  %v717 = vsub.f32 %v589, %v701
  %v718 = vsel %vm525, %v702, 0.0
  %v719 = vsel %vm525, %v703, 0.0
  %v720 = vsel %vm525, %v704, 0.0
  %v721 = vsel %vm525, %v705, 0.0
  %v722 = vsel %vm525, %v706, 0.0
  %v723 = vsel %vm525, %v707, 0.0
  %v724 = vsel %vm525, %v708, 0.0
  %v725 = vsel %vm525, %v709, 0.0
  %v726 = vsel %vm525, %v710, 0.0
  %v727 = vsel %vm525, %v711, 0.0
  %v728 = vsel %vm525, %v712, 0.0
  %v729 = vsel %vm525, %v713, 0.0
  %v730 = vsel %vm525, %v714, 0.0
  %v731 = vsel %vm525, %v715, 0.0
  %v732 = vsel %vm525, %v716, 0.0
  %v733 = vsel %vm525, %v717, 0.0
  %734 = vst [vmem:[%s6] sm:$0xff] %v718
  %735 = vst [vmem:[%s6 + $0x8] sm:$0xff] %v719
  %736 = vst [vmem:[%s6 + $0x10] sm:$0xff] %v720
  %737 = vst [vmem:[%s6 + $0x18] sm:$0xff] %v721
  %738 = vst [vmem:[%s6 + $0x20] sm:$0xff] %v722
  %739 = vst [vmem:[%s6 + $0x28] sm:$0xff] %v723
  %740 = vst [vmem:[%s6 + $0x30] sm:$0xff] %v724
  %741 = vst [vmem:[%s6 + $0x38] sm:$0xff] %v725
  %742 = vst [vmem:[%s6 + $0x40] sm:$0xff] %v726
  %743 = vst [vmem:[%s6 + $0x48] sm:$0xff] %v727
  %744 = vst [vmem:[%s6 + $0x50] sm:$0xff] %v728
  %745 = vst [vmem:[%s6 + $0x58] sm:$0xff] %v729
  %746 = vst [vmem:[%s6 + $0x60] sm:$0xff] %v730
  %747 = vst [vmem:[%s6 + $0x68] sm:$0xff] %v731
  %748 = vst [vmem:[%s6 + $0x70] sm:$0xff] %v732
  %749 = vst [vmem:[%s6 + $0x78] sm:$0xff] %v733
  // Predicated region
  $region26: #{gcn_forward.1} parent=0 // pred_check
    _
  $region27: #{gcn_forward.1} parent=0 // pred_check_branch
    %751 = sbr.rel (0) target = $region29
  $region28: #{gcn_forward.1} parent=0 // pred_region
    _
  $region29: #{gcn_forward.1} parent=0 // pred_fallthru
    _
  // Predicated region
  $region30: #{gcn_forward.1} parent=0 // pred_check
    _
  $region31: #{gcn_forward.1} parent=0 // pred_check_branch
    %753 = sbr.rel (0) target = $region33
  $region32: #{gcn_forward.1} parent=0 // pred_region
    _
  $region33: #{gcn_forward.1} parent=0 // pred_fallthru
    _

</llo_original>
